<compile_context>
chip_gen: v6e
topology: v6e:2x2x1
jax: 0.10.0
libtpu: 0.0.40
codegen_flags: <defaults>
</compile_context>

<pallas_src>
import functools

import jax
import jax.numpy as jnp
from jax import lax
from jax.experimental import pallas as pl
from jax.experimental.pallas import tpu as pltpu

# Small, self-consistent synthetic sizes (module fixes n_embed=384,
# block_size=256; scaled down but semantics identical).
N_EMBED = 32      # C
HEAD_SIZE = 16    # H
SEQ_LEN = 8       # T  (<= block_size, so tril mask is just a causal mask of size T)
BATCH = 2         # B
DROPOUT_P = 0.2   # identity in eval mode (see TODO above)

LANE = 128        # TPU lane width


def _head_kernel(x_ref, w_ref, o_ref, *, seq_len, batch_block, h_pad, mxu_dtype):
    """x_ref: (rows, C); w_ref: (C, 3*h_pad) = [Wk|0 | Wq*scale|0 | Wv|0];
    o_ref: (rows, h_pad) with only the first H columns meaningful."""
    T = seq_len

    x = x_ref[...].astype(mxu_dtype)               # (rows, C)
    w = w_ref[...].astype(mxu_dtype)               # (C, 3*h_pad)

    # Single fused projection; each of k/q/v occupies its own 128-lane slab,
    # so the slices below are vreg-boundary aligned (free).
    kqv = jnp.dot(x, w, preferred_element_type=jnp.float32)   # (rows, 3*h_pad)
    k = kqv[:, 0 * h_pad:1 * h_pad]
    q = kqv[:, 1 * h_pad:2 * h_pad]                # 1/sqrt(C) folded into Wq
    v = kqv[:, 2 * h_pad:3 * h_pad]

    # Causal mask, built once (hoisted out of the per-batch loop).
    row = lax.broadcasted_iota(jnp.int32, (T, T), 0)
    col = lax.broadcasted_iota(jnp.int32, (T, T), 1)
    causal = col <= row

    # batch_block is small by design (batch lives in the grid), so this static
    # unroll is 1-2 iterations and does not inflate live ranges.
    for b in range(batch_block):
        sl = slice(b * T, (b + 1) * T)
        qb = q[sl]                                 # (T, h_pad)
        kb = k[sl]                                 # (T, h_pad)
        vb = v[sl]                                 # (T, h_pad)

        # q @ k^T without materializing a transpose: contract lane dim of both.
        # Zero-padded lanes contribute nothing.
        s = lax.dot_general(qb, kb, (((1,), (1,)), ((), ())),
                            preferred_element_type=jnp.float32)   # (T, T)

        # Causal mask with a large finite negative (bf16-safe, no inf-inf NaN).
        s = jnp.where(causal, s, jnp.float32(-1e30))

        # Numerically-stable softmax in f32; denominator via EUP approx recip.
        s = s - jnp.max(s, axis=-1, keepdims=True)
        p = jnp.exp(s)
        p = p * pl.reciprocal(jnp.sum(p, axis=-1, keepdims=True), approx=True)

        # out = wei @ v : N = h_pad = 128 -> lane-dense, unmasked stores.
        ob = jnp.dot(p.astype(mxu_dtype), vb.astype(mxu_dtype),
                     preferred_element_type=jnp.float32)          # (T, h_pad)
        o_ref[sl, :] = ob.astype(o_ref.dtype)


def _default_batch_block(B):
    """Largest divisor of B that still leaves >= 2 grid steps (for pipelining
    and v7x dual-TC sharding); falls back to B when B == 1."""
    for d in range(B // 2, 0, -1):
        if B % d == 0:
            return d
    return B


def head_forward(x, w_key, w_query, w_value, *, batch_block=None,
                 mxu_dtype=jnp.float32, vmem_limit_bytes=None):
    """x: (B, T, C); w_*: PyTorch nn.Linear weights of shape (H, C).

    batch_block: batch elements per grid step.  Default keeps >= 2 grid steps
      (double-buffering + v7x dual TC).  On v6e (single TC) a larger
      batch_block / bigger resident block is fine as long as it fits VMEM.
    mxu_dtype: matmul-input dtype.  Keep float32 at these toy sizes; use
      jnp.bfloat16 at module scale (C=384, T=256) on v6e/v7x for full MXU rate
      (accumulation stays f32 via preferred_element_type; all non-matmul math
      stays f32, which matters on v5e).
    """
    B, T, C = x.shape
    H = w_key.shape[0]
    assert T % 8 == 0, "T must be a multiple of 8 (sublane) — pad the sequence"
    if batch_block is None:
        batch_block = _default_batch_block(B)
    assert B % batch_block == 0, "batch_block must divide B"
    nb = B // batch_block
    rows = batch_block * T

    # Pad each projection to its own lane-dense slab.
    h_pad = max(LANE, ((H + LANE - 1) // LANE) * LANE)

    def _pad_lanes(wt):                                   # wt: (C, H) -> (C, h_pad)
        return jnp.pad(wt, ((0, 0), (0, h_pad - wt.shape[1])))

    # nn.Linear applies x @ W^T; fold the 1/sqrt(C) score scale into Wq.
    scale = jnp.asarray(C, jnp.float32) ** jnp.float32(-0.5)
    w_kqv = jnp.concatenate(
        [_pad_lanes(w_key.T),
         _pad_lanes(w_query.T * scale),
         _pad_lanes(w_value.T)], axis=1).astype(x.dtype)  # (C, 3*h_pad)

    # Flatten (B, T, C) -> (B*T, C): plain 2D tiles, larger MXU M dimension.
    x2d = x.reshape(B * T, C)

    kernel = functools.partial(
        _head_kernel, seq_len=T, batch_block=batch_block, h_pad=h_pad,
        mxu_dtype=mxu_dtype)

    itemsize = jnp.dtype(x.dtype).itemsize
    # Advisory cost estimate (logical flops, not padded).
    cost = pl.CostEstimate(
        flops=int(2 * B * T * C * 3 * H + 4 * B * T * T * H),
        transcendentals=int(B * T * T),
        bytes_accessed=int(x2d.size * itemsize + w_kqv.size * itemsize
                           + B * T * H * itemsize))

    if vmem_limit_bytes is None:
        # Double-buffered in/out blocks + weights + f32 intermediates, with headroom.
        block_bytes = (2 * rows * C * itemsize            # x block (x2 buffers)
                       + 2 * rows * h_pad * itemsize      # out block (x2 buffers)
                       + 2 * C * 3 * h_pad * itemsize     # fused weights
                       + rows * 3 * h_pad * 4             # kqv (f32)
                       + 3 * T * T * 4)                   # score intermediates
        vmem_limit_bytes = int(min(max(4 * block_bytes, 16 * 2**20), 100 * 2**20))

    out_pad = pl.pallas_call(
        kernel,
        out_shape=jax.ShapeDtypeStruct((B * T, h_pad), x.dtype),
        grid_spec=pltpu.PrefetchScalarGridSpec(
            num_scalar_prefetch=0,
            grid=(nb,),
            in_specs=[
                pl.BlockSpec((rows, C), lambda i: (i, 0)),
                pl.BlockSpec((C, 3 * h_pad), lambda i: (0, 0)),
            ],
            out_specs=pl.BlockSpec((rows, h_pad), lambda i: (i, 0)),
        ),
        compiler_params=pltpu.CompilerParams(
            dimension_semantics=("parallel",),
            vmem_limit_bytes=vmem_limit_bytes),
        cost_estimate=cost,
    )(x2d, w_kqv)

    # Slice the lane padding back off in the wrapper (cheap XLA slice).
    return out_pad[:, :H].reshape(B, T, H)


def head_reference(x, w_key, w_query, w_value):
    """Pure-JAX reference matching the PyTorch forward (eval mode)."""
    B, T, C = x.shape
    k = x @ w_key.T
    q = x @ w_query.T
    v = x @ w_value.T
    wei = (q @ jnp.swapaxes(k, -2, -1)) * (C ** -0.5)
    mask = jnp.tril(jnp.ones((T, T), dtype=bool))
    wei = jnp.where(mask, wei, -jnp.inf)
    wei = jax.nn.softmax(wei, axis=-1)
    return wei @ v


if __name__ == "__main__":
    key = jax.random.PRNGKey(0)
    kx, kk, kq, kv = jax.random.split(key, 4)

    x = jax.random.normal(kx, (BATCH, SEQ_LEN, N_EMBED), dtype=jnp.float32)
    # Deterministic "Linear" weights, PyTorch layout (out_features, in_features).
    w_key = jax.random.normal(kk, (HEAD_SIZE, N_EMBED), dtype=jnp.float32) * 0.05
    w_query = jax.random.normal(kq, (HEAD_SIZE, N_EMBED), dtype=jnp.float32) * 0.05
    w_value = jax.random.normal(kv, (HEAD_SIZE, N_EMBED), dtype=jnp.float32) * 0.05

    ref = head_reference(x, w_key, w_query, w_value)

    # Default path: batch in the grid (>= 2 "parallel" steps, double-buffered).
    out = head_forward(x, w_key, w_query, w_value)
    out = jax.block_until_ready(out)
    assert out.shape == (BATCH, SEQ_LEN, HEAD_SIZE)
    # Tolerance accounts for the EUP approximate reciprocal in the softmax.
    assert jnp.allclose(out, ref, atol=2e-3, rtol=2e-3), "mismatch vs reference"

    # Big-block path (e.g. v6e single-TC preference): whole batch in one block.
    out2 = head_forward(x, w_key, w_query, w_value, batch_block=BATCH)
    out2 = jax.block_until_ready(out2)
    assert jnp.allclose(out2, ref, atol=2e-3, rtol=2e-3), "mismatch (big block)"

    print("KERNEL_OK")
</pallas_src>

<mosaic_0001>
module attributes {stable_mosaic.version = 11 : i64} {
  func.func @_head_kernel(%arg0: i32, %arg1: memref<8x32xf32, #tpu.memory_space<vmem>>, %arg2: memref<32x384xf32, #tpu.memory_space<vmem>>, %arg3: memref<8x128xf32, #tpu.memory_space<vmem>>) attributes {dimension_semantics = [#tpu.dimension_semantics<parallel>], iteration_bounds = array<i64: 2>, scalar_prefetch = 0 : i64, scratch_operands = 0 : i64, tpu.core_type = #tpu.core_type<tc>, window_params = [{transform_indices = @transform_0, window_bounds = array<i64: 8, 32>}, {pipeline_mode = #tpu.pipeline_mode<synchronous>, transform_indices = @transform_1, window_bounds = array<i64: 32, 384>}, {transform_indices = @transform_2, window_bounds = array<i64: 8, 128>}]} {
    %c0 = arith.constant 0 : index
    %c0_0 = arith.constant 0 : index
    %0 = vector.load %arg1[%c0, %c0_0] : memref<8x32xf32, #tpu.memory_space<vmem>>, vector<8x32xf32>
    %c0_1 = arith.constant 0 : index
    %c0_2 = arith.constant 0 : index
    %1 = vector.load %arg2[%c0_1, %c0_2] : memref<32x384xf32, #tpu.memory_space<vmem>>, vector<32x384xf32>
    %cst = arith.constant dense<0.000000e+00> : vector<8x384xf32>
    %2 = tpu.matmul %0, %1, %cst {dimension_numbers = #tpu.dot_dimension_numbers<[1], [0], [0], [1], [0, 0, 1, 1], [], []>} : vector<8x32xf32>, vector<32x384xf32>, vector<8x384xf32> -> vector<8x384xf32>
    %3 = vector.extract_strided_slice %2 {offsets = [0, 0], sizes = [8, 128], strides = [1, 1]} : vector<8x384xf32> to vector<8x128xf32>
    %4 = vector.extract_strided_slice %2 {offsets = [0, 128], sizes = [8, 128], strides = [1, 1]} : vector<8x384xf32> to vector<8x128xf32>
    %5 = vector.extract_strided_slice %2 {offsets = [0, 256], sizes = [8, 128], strides = [1, 1]} : vector<8x384xf32> to vector<8x128xf32>
    %6 = tpu.iota {dimensions = array<i32: 0>} : vector<8x8xi32>
    %7 = tpu.iota {dimensions = array<i32: 1>} : vector<8x8xi32>
    %8 = arith.cmpi sle, %7, %6 : vector<8x8xi32>
    %cst_3 = arith.constant dense<0.000000e+00> : vector<8x8xf32>
    %9 = tpu.matmul %4, %3, %cst_3 {dimension_numbers = #tpu.dot_dimension_numbers<[1], [1], [0], [0], [0, 0, 1, 0], [], []>} : vector<8x128xf32>, vector<8x128xf32>, vector<8x8xf32> -> vector<8x8xf32>
    %cst_4 = arith.constant -1.000000e+30 : f32
    %10 = vector.broadcast %cst_4 : f32 to vector<8x8xf32>
    %11 = arith.select %8, %9, %10 : vector<8x8xi1>, vector<8x8xf32>
    %cst_5 = arith.constant dense<0xFF800000> : vector<8xf32>
    %12 = vector.multi_reduction <maximumf>, %11, %cst_5 [1] : vector<8x8xf32> to vector<8xf32>
    %13 = vector.shape_cast %12 : vector<8xf32> to vector<8x1xf32>
    %14 = vector.broadcast %13 : vector<8x1xf32> to vector<8x8xf32>
    %15 = arith.subf %11, %14 : vector<8x8xf32>
    %16 = math.exp %15 : vector<8x8xf32>
    %cst_6 = arith.constant dense<0.000000e+00> : vector<8xf32>
    %17 = vector.multi_reduction <add>, %16, %cst_6 [1] : vector<8x8xf32> to vector<8xf32>
    %18 = vector.shape_cast %17 : vector<8xf32> to vector<8x1xf32>
    %19 = tpu.reciprocal %18 {approx = true} : vector<8x1xf32> -> vector<8x1xf32>
    %20 = vector.broadcast %19 : vector<8x1xf32> to vector<8x8xf32>
    %21 = arith.mulf %16, %20 : vector<8x8xf32>
    %cst_7 = arith.constant dense<0.000000e+00> : vector<8x128xf32>
    %22 = tpu.matmul %21, %5, %cst_7 {dimension_numbers = #tpu.dot_dimension_numbers<[1], [0], [0], [1], [0, 0, 1, 1], [], []>} : vector<8x8xf32>, vector<8x128xf32>, vector<8x128xf32> -> vector<8x128xf32>
    %c0_8 = arith.constant 0 : index
    %c0_9 = arith.constant 0 : index
    %23 = vector.load %arg3[%c0_8, %c0_9] : memref<8x128xf32, #tpu.memory_space<vmem>>, vector<8x128xf32>
    tpu.vector_store %arg3[%c0_8, %c0_9], %22 {strides = array<i32>} : memref<8x128xf32, #tpu.memory_space<vmem>>, vector<8x128xf32>,
    return
  }
  func.func @transform_0(%arg0: i32) -> (i32, i32) {
    %c0_i32 = arith.constant 0 : i32
    %c0_i32_0 = arith.constant 0 : i32
    return %arg0, %c0_i32 : i32, i32
  }
  func.func @transform_1(%arg0: i32) -> (i32, i32) {
    %c0_i32 = arith.constant 0 : i32
    %c0_i32_0 = arith.constant 0 : i32
    %c0_i32_1 = arith.constant 0 : i32
    return %c0_i32, %c0_i32_0 : i32, i32
  }
  func.func @transform_2(%arg0: i32) -> (i32, i32) {
    %c0_i32 = arith.constant 0 : i32
    %c0_i32_0 = arith.constant 0 : i32
    return %arg0, %c0_i32 : i32, i32
  }
}

</mosaic_0001>

<llo_original>
// kernel: tpu_custom_call.1
$region0: #{tpu_custom_call.1}
  #allocation0 [shape = 'u32[]', space=smem, size = 0x4, offset = 0x4, fixed_abs, tag = 'smem constant byte address 0x4 - core index']
  #allocation1 [shape = 'u32[144,128]{1,0:T(1,128)}', space=vmem, size = 0x12000, scoped, tag = 'internal scratch']
  %s0 = inlined_call_operand.hbm [shape: f32[16,32], index: 0, kind: input, shape index: {}]
  %s1 = inlined_call_operand.hbm [shape: f32[32,384], index: 1, kind: input, shape index: {}]
  %s2 = inlined_call_operand.hbm [shape: f32[16,128], index: 2, kind: output, shape index: {}]
  %s3 = sld [smem:[#allocation0]]
  $region49: #{tpu_custom_call.1} parent=0
    _
  %s5 = ssub.s32 1, %s3
  %s6 = scalar_select 0, %s5, %s3
  $region1: #{tpu_custom_call.1} parent=0
    #allocation2 [shape = 'u8[8192]{0}', space=vmem, size = 0x2000, scoped, tag = 'input window, operand 0']
    #allocation3 [shape = 's32[2]{0}', space=sflag, size = 0x8, scoped, tag = 'scoped memory for tpu_custom_call.1']
    #allocation4 [shape = 's32[2]{0}', space=sflag, size = 0x8, scoped, tag = 'scoped memory for tpu_custom_call.1']
    #allocation5 [shape = 'u8[49152]{0}', space=vmem, size = 0xc000, scoped, tag = 'input window, operand 1, single buffered']
    #allocation6 [shape = 's32[1]{0}', space=sflag, size = 0x4, scoped, tag = 'scoped memory for tpu_custom_call.1']
    #allocation7 [shape = 'u8[8192]{0}', space=vmem, size = 0x2000, scoped, tag = 'output window, operand 0']
    %7 = vsyncpa [#allocation3], 0
    %s8 = scalar_lea.sflag [#allocation3], 1
    %9 = vsyncpa %s8, 0
    %10 = vsyncpa [#allocation6], 0
    %11 = vsyncpa [#allocation4], 0
    %s12 = scalar_lea.sflag [#allocation4], 1
    %13 = vsyncpa %s12, 0
    loop: start=0, step=1, limit=4
    $region2: #{tpu_custom_call.1} parent=1 // loop_pre_header
      _
    $region3: #{tpu_custom_call.1} parent=1 // loop_header
      %s15 = sphi 0, %s19
      %p16 = scmp.ge.s32.totalorder %s15, 4
      %s25 = sphi 0, %s27
      %s28 = sphi 0, %s25
      %s29 = sphi 0, %s28
      %s45 = sphi 0, %s29
      %s49 = sphi 0, %s49
      %s51 = sphi 0, %s49
      %s52 = sphi 0, %s51
      %s66 = sphi 0, %s52
      %s72 = sphi 0, %s74
      %s75 = sphi 0, %s72
      %s76 = sphi 0, %s75
      %s92 = sphi 0, %s76
    $region4: #{tpu_custom_call.1} parent=1 // loop_header_branch
      %18 = sbr.rel (%p16) target = $region8
    $region5: #{tpu_custom_call.1} parent=1 // loop_body
      %s20 = ssub.s32 %s15, 1
      %s21 = ssub.s32 %s15, 2
      %s22 = sadd.s32 %s15, 1
      %s23 = ssub.s32 %s15, %s22
      %p24 = scmp.eq.s32.totalorder %s23, 0
      %s26 = sadd.s32 %s25, 1
      %s27 = scalar_select %p24, %s25, %s26
      %p30 = pneg %p24
      %p31 = scmp.eq.s32.totalorder %s15, 1
      %p32 = por %p30, %p31
      %p33 = scmp.ne.s32.totalorder %s25, %s28
      %p34 = scmp.eq.s32.totalorder %s15, 0
      %p35 = por %p33, %p34
      %p36 = scmp.ne.s32.totalorder %s25, %s28
      %p37 = scmp.eq.s32.totalorder %s20, 1
      %p38 = por %p36, %p37
      %p39 = scmp.ne.s32.totalorder %s28, %s29
      %p40 = scmp.eq.s32.totalorder %s20, 0
      %p41 = por %p39, %p40
      %p42 = scmp.ne.s32.totalorder %s28, %s29
      %p43 = scmp.eq.s32.totalorder %s21, 1
      %p44 = por %p42, %p43
      %p46 = scmp.ne.s32.totalorder %s29, %s45
      %p47 = scmp.eq.s32.totalorder %s21, 0
      %p48 = por %p46, %p47
      %s50 = sadd.s32 %s49, 1
      %p53 = scmp.eq.s32.totalorder %s15, 1
      %p54 = scmp.ne.s32.totalorder %s49, %s51
      %p55 = scmp.eq.s32.totalorder %s15, 0
      %p56 = por %p54, %p55
      %p57 = scmp.ne.s32.totalorder %s49, %s51
      %p58 = scmp.eq.s32.totalorder %s20, 1
      %p59 = por %p57, %p58
      %p60 = scmp.ne.s32.totalorder %s51, %s52
      %p61 = scmp.eq.s32.totalorder %s20, 0
      %p62 = por %p60, %p61
      %p63 = scmp.ne.s32.totalorder %s51, %s52
      %p64 = scmp.eq.s32.totalorder %s21, 1
      %p65 = por %p63, %p64
      %p67 = scmp.ne.s32.totalorder %s52, %s66
      %p68 = scmp.eq.s32.totalorder %s21, 0
      %p69 = por %p67, %p68
      %s70 = ssub.s32 %s15, %s22
      %p71 = scmp.eq.s32.totalorder %s70, 0
      %s73 = sadd.s32 %s72, 1
      %s74 = scalar_select %p71, %s72, %s73
      %p77 = pneg %p71
      %p78 = scmp.eq.s32.totalorder %s15, 1
      %p79 = por %p77, %p78
      %p80 = scmp.ne.s32.totalorder %s72, %s75
      %p81 = scmp.eq.s32.totalorder %s15, 0
      %p82 = por %p80, %p81
      %p83 = scmp.ne.s32.totalorder %s72, %s75
      %p84 = scmp.eq.s32.totalorder %s20, 1
      %p85 = por %p83, %p84
      %p86 = scmp.ne.s32.totalorder %s75, %s76
      %p87 = scmp.eq.s32.totalorder %s20, 0
      %p88 = por %p86, %p87
      %p89 = scmp.ne.s32.totalorder %s75, %s76
      %p90 = scmp.eq.s32.totalorder %s21, 1
      %p91 = por %p89, %p90
      %p93 = scmp.ne.s32.totalorder %s76, %s92
      %p94 = scmp.eq.s32.totalorder %s21, 0
      %p95 = por %p93, %p94
      %p96 = scmp.le.s32.totalorder 1, %s15
      %p97 = scmp.lt.s32.totalorder %s15, 3
      %p98 = pnand %p96, %p97
      %p99 = pneg %p98
      // Predicated region
      $region9: #{tpu_custom_call.1} parent=5 // pred_check
        _
      $region10: #{tpu_custom_call.1} parent=5 // pred_check_branch
        %101 = sbr.rel (%p98) target = $region12
      $region11: #{tpu_custom_call.1} parent=5 // pred_region
        %s102 = ssub.s32 %s15, 1
        // Predicated region
        $region13: #{tpu_custom_call.1} parent=11 // pred_check
          %p103 = pneg %p62
        $region14: #{tpu_custom_call.1} parent=11 // pred_check_branch
          %105 = sbr.rel (%p103) target = $region16
        $region15: #{tpu_custom_call.1} parent=11 // pred_region
          %s107 = ssub.s32 1536, 1536
          %108 = vsyncadd [#allocation6], %s107
          %s109 = sshll.u32 [#allocation5], 4
          %s110 = int_to_ptr.vmem [resolvable:$true] %s109
          %115 = dma.hbm_to_vmem [thread:$0]  %s1, 1536, %s110, [#allocation6], 384, 384, 24
        $region16: #{tpu_custom_call.1} parent=11 // pred_fallthru
          _
      $region12: #{tpu_custom_call.1} parent=5 // pred_fallthru
        _
      %p116 = scmp.lt.s32.totalorder %s15, 2
      // Predicated region
      $region17: #{tpu_custom_call.1} parent=5 // pred_check
        %p117 = pneg %p116
      $region18: #{tpu_custom_call.1} parent=5 // pred_check_branch
        %119 = sbr.rel (%p117) target = $region20
      $region19: #{tpu_custom_call.1} parent=5 // pred_region
        // Predicated region
        $region21: #{tpu_custom_call.1} parent=19 // pred_check
          %p120 = pneg %p35
        $region22: #{tpu_custom_call.1} parent=19 // pred_check_branch
          %122 = sbr.rel (%p120) target = $region24
        $region23: #{tpu_custom_call.1} parent=19 // pred_region
          %s123 = sand.u32 %s25, 1
          %s124 = scalar_lea.sflag [#allocation3], %s123
          %s125 = sand.u32 %s25, 1
          %s126 = smul.addr %s125, 8
          %s127 = scalar_lea.vmem [#allocation2], %s126
          %s129 = ssub.s32 128, 128
          %130 = vsyncadd %s124, %s129
          %s131 = smul.addr %s15, 128
          %s132 = scalar_lea.hbm %s0, %s131
          %s134 = sshll.u32 %s127, 4
          %s135 = int_to_ptr.vmem [resolvable:$true] %s134
          %137 = dma.hbm_to_vmem [thread:$0]  %s132, 128, %s135, %s124
        $region24: #{tpu_custom_call.1} parent=19 // pred_fallthru
          _
      $region20: #{tpu_custom_call.1} parent=5 // pred_fallthru
        _
      %p138 = scmp.le.s32.totalorder 1, %s15
      %p139 = scmp.lt.s32.totalorder %s15, 3
      %p140 = pnand %p138, %p139
      %p141 = pneg %p140
      // Predicated region
      $region25: #{tpu_custom_call.1} parent=5 // pred_check
        _
      $region26: #{tpu_custom_call.1} parent=5 // pred_check_branch
        %143 = sbr.rel (%p140) target = $region28
      $region27: #{tpu_custom_call.1} parent=5 // pred_region
        %s144 = ssub.s32 %s15, 1
        %s145 = sand.u32 %s28, 1
        %s146 = scalar_lea.sflag [#allocation3], %s145
        %s147 = sand.u32 %s28, 1
        %s148 = smul.addr %s147, 8
        %s149 = scalar_lea.vmem [#allocation2], %s148
        // Predicated region
        $region29: #{tpu_custom_call.1} parent=27 // pred_check
          %p150 = pneg %p41
        $region30: #{tpu_custom_call.1} parent=27 // pred_check_branch
          %152 = sbr.rel (%p150) target = $region32
        $region31: #{tpu_custom_call.1} parent=27 // pred_region
          %153 = dma.done %s146, 128
        $region32: #{tpu_custom_call.1} parent=27 // pred_fallthru
          _
        // Predicated region
        $region33: #{tpu_custom_call.1} parent=27 // pred_check
          %p154 = pneg %p62
        $region34: #{tpu_custom_call.1} parent=27 // pred_check_branch
          %156 = sbr.rel (%p154) target = $region36
        $region35: #{tpu_custom_call.1} parent=27 // pred_region
          %157 = dma.done [#allocation6], 1536
        $region36: #{tpu_custom_call.1} parent=27 // pred_fallthru
          _
        %s158 = sand.u32 %s28, 1
        %s159 = scalar_lea.sflag [#allocation3], %s158
        %s160 = sand.u32 %s28, 1
        %s161 = smul.addr %s160, 8
        %s162 = scalar_lea.vmem [#allocation2], %s161
        %p163 = pneg %p41
        %p164 = pneg %p38
        %p165 = pneg %p62
        %p166 = pneg %p59
        %p167 = pneg %p88
        %p168 = pneg %p85
        %s169 = sand.u32 %s75, 1
        %s170 = scalar_lea.sflag [#allocation4], %s169
        %s171 = sand.u32 %s75, 1
        %s172 = smul.addr %s171, 8
        %s173 = scalar_lea.vmem [#allocation7], %s172
        %v174 = vld [vmem:[%s149] sm:$0xff]
        %v175 = vld [vmem:[#allocation5] sm:$0xff]
        %v176 = vld [vmem:[#allocation5 + $0x8] sm:$0xff]
        %v177 = vld [vmem:[#allocation5 + $0x10] sm:$0xff]
        %v178 = vld [vmem:[#allocation5 + $0x18] sm:$0xff]
        %v179 = vld [vmem:[#allocation5 + $0x20] sm:$0xff]
        %v180 = vld [vmem:[#allocation5 + $0x28] sm:$0xff]
        %v181 = vld [vmem:[#allocation5 + $0x30] sm:$0xff]
        %v182 = vld [vmem:[#allocation5 + $0x38] sm:$0xff]
        %v183 = vld [vmem:[#allocation5 + $0x40] sm:$0xff]
        %v184 = vld [vmem:[#allocation5 + $0x48] sm:$0xff]
        %v185 = vld [vmem:[#allocation5 + $0x50] sm:$0xff]
        %v186 = vld [vmem:[#allocation5 + $0x58] sm:$0xff]
        %vm187 = vcmask 261120
        %v189 = vsel %vm187, %v174, 0
        %191 = vmatprep.subr.mxu0 0.0
        %192 = vmatpush1.msra.mxu0 0.0
        %193 = vmatprep.subr.mxu0 0.0
        %194 = vmatpush1.msra.mxu0 0.0
        %195 = vmatprep.subr.mxu0 0.0
        %196 = vmatpush1.msra.mxu0 0.0
        %197 = vmatprep.subr.mxu0 0.0
        %198 = vmatpush1.msra.mxu0 0.0
        %199 = vmatprep.subr.mxu0 0.0
        %200 = vmatpush1.msra.mxu0 0.0
        %201 = vmatprep.subr.mxu0 0.0
        %202 = vmatpush1.msra.mxu0 0.0
        %203 = vmatprep.subr.mxu0 0.0
        %204 = vmatpush1.msra.mxu0 0.0
        %205 = vmatprep.subr.mxu0 0.0
        %206 = vmatpush1.msra.mxu0 0.0
        %207 = vmatprep.subr.mxu0 0.0
        %208 = vmatpush1.msra.mxu0 0.0
        %209 = vmatprep.subr.mxu0 0.0
        %210 = vmatpush1.msra.mxu0 0.0
        %211 = vmatprep.subr.mxu0 0.0
        %212 = vmatpush1.msra.mxu0 0.0
        %213 = vmatprep.subr.mxu0 0.0
        %214 = vmatpush1.msra.mxu0 0.0
        %215 = vmatprep.subr.mxu0 %v185
        %216 = vmatpush1.msra.mxu0 %v184
        %217 = vmatprep.subr.mxu0 %v182
        %218 = vmatpush1.msra.mxu0 %v181
        %219 = vmatprep.subr.mxu0 %v179
        %220 = vmatpush1.msra.mxu0 %v178
        %221 = vmatprep.subr.mxu0 %v176
        %222 = vmatpush1.msra.mxu0 %v175
        %223 = vmatprep.subr.mxu0 0.0
        %224 = vmatpush2.msra.mxu0 0.0
        %225 = vmatprep.subr.mxu0 0.0
        %226 = vmatpush2.msra.mxu0 0.0
        %227 = vmatprep.subr.mxu0 0.0
        %228 = vmatpush2.msra.mxu0 0.0
        %229 = vmatprep.subr.mxu0 0.0
        %230 = vmatpush2.msra.mxu0 0.0
        %231 = vmatprep.subr.mxu0 0.0
        %232 = vmatpush2.msra.mxu0 0.0
        %233 = vmatprep.subr.mxu0 0.0
        %234 = vmatpush2.msra.mxu0 0.0
        %235 = vmatprep.subr.mxu0 0.0
        %236 = vmatpush2.msra.mxu0 0.0
        %237 = vmatprep.subr.mxu0 0.0
        %238 = vmatpush2.msra.mxu0 0.0
        %239 = vmatprep.subr.mxu0 0.0
        %240 = vmatpush2.msra.mxu0 0.0
        %241 = vmatprep.subr.mxu0 0.0
        %242 = vmatpush2.msra.mxu0 0.0
        %243 = vmatprep.subr.mxu0 0.0
        %244 = vmatpush2.msra.mxu0 0.0
        %245 = vmatprep.subr.mxu0 0.0
        %246 = vmatpush2.msra.mxu0 0.0
        %247 = vmatprep.subr.mxu0 0.0
        %248 = vmatpush2.msra.mxu0 0.0
        %249 = vmatprep.subr.mxu0 0.0
        %250 = vmatpush2.msra.mxu0 0.0
        %251 = vmatprep.subr.mxu0 0.0
        %252 = vmatpush2.msra.mxu0 0.0
        %253 = vmatprep.subr.mxu0 0.0
        %254 = vmatpush2.msra.mxu0 0.0
        %255 = vmatprep.mubr.f32.mxu0 0.0
        %256 = vmatmul.mubr.f32.gmra.mxu0 %v189
        %v257 = vpop.f32.mrf.mxu0
        %v258 = vadd.f32 0.0, %v257
        %v259 = vpop.f32.mrf.mxu0
        %v260 = vadd.f32 0.0, %v259
        %261 = vdwg.mxu0
        %262 = vmatprep.subr.mxu0 0.0
        %263 = vmatpush1.msra.mxu0 0.0
        %264 = vmatprep.subr.mxu0 0.0
        %265 = vmatpush1.msra.mxu0 0.0
        %266 = vmatprep.subr.mxu0 0.0
        %267 = vmatpush1.msra.mxu0 0.0
        %268 = vmatprep.subr.mxu0 0.0
        %269 = vmatpush1.msra.mxu0 0.0
        %270 = vmatprep.subr.mxu0 0.0
        %271 = vmatpush1.msra.mxu0 0.0
        %272 = vmatprep.subr.mxu0 0.0
        %273 = vmatpush1.msra.mxu0 0.0
        %274 = vmatprep.subr.mxu0 0.0
        %275 = vmatpush1.msra.mxu0 0.0
        %276 = vmatprep.subr.mxu0 0.0
        %277 = vmatpush1.msra.mxu0 0.0
        %278 = vmatprep.subr.mxu0 0.0
        %279 = vmatpush1.msra.mxu0 0.0
        %280 = vmatprep.subr.mxu0 0.0
        %281 = vmatpush1.msra.mxu0 0.0
        %282 = vmatprep.subr.mxu0 0.0
        %283 = vmatpush1.msra.mxu0 0.0
        %284 = vmatprep.subr.mxu0 0.0
        %285 = vmatpush1.msra.mxu0 0.0
        %286 = vmatprep.subr.mxu0 0.0
        %287 = vmatpush1.msra.mxu0 %v186
        %288 = vmatprep.subr.mxu0 0.0
        %289 = vmatpush1.msra.mxu0 %v183
        %290 = vmatprep.subr.mxu0 0.0
        %291 = vmatpush1.msra.mxu0 %v180
        %292 = vmatprep.subr.mxu0 0.0
        %293 = vmatpush1.msra.mxu0 %v177
        %294 = vmatprep.subr.mxu0 0.0
        %295 = vmatpush2.msra.mxu0 0.0
        %296 = vmatprep.subr.mxu0 0.0
        %297 = vmatpush2.msra.mxu0 0.0
        %298 = vmatprep.subr.mxu0 0.0
        %299 = vmatpush2.msra.mxu0 0.0
        %300 = vmatprep.subr.mxu0 0.0
        %301 = vmatpush2.msra.mxu0 0.0
        %302 = vmatprep.subr.mxu0 0.0
        %303 = vmatpush2.msra.mxu0 0.0
        %304 = vmatprep.subr.mxu0 0.0
        %305 = vmatpush2.msra.mxu0 0.0
        %306 = vmatprep.subr.mxu0 0.0
        %307 = vmatpush2.msra.mxu0 0.0
        %308 = vmatprep.subr.mxu0 0.0
        %309 = vmatpush2.msra.mxu0 0.0
        %310 = vmatprep.subr.mxu0 0.0
        %311 = vmatpush2.msra.mxu0 0.0
        %312 = vmatprep.subr.mxu0 0.0
        %313 = vmatpush2.msra.mxu0 0.0
        %314 = vmatprep.subr.mxu0 0.0
        %315 = vmatpush2.msra.mxu0 0.0
        %316 = vmatprep.subr.mxu0 0.0
        %317 = vmatpush2.msra.mxu0 0.0
        %318 = vmatprep.subr.mxu0 0.0
        %319 = vmatpush2.msra.mxu0 0.0
        %320 = vmatprep.subr.mxu0 0.0
        %321 = vmatpush2.msra.mxu0 0.0
        %322 = vmatprep.subr.mxu0 0.0
        %323 = vmatpush2.msra.mxu0 0.0
        %324 = vmatprep.subr.mxu0 0.0
        %325 = vmatpush2.msra.mxu0 0.0
        %326 = vmatprep.mubr.f32.mxu0 0.0
        %327 = vmatmul.mubr.f32.gmra.mxu0 %v189
        %v328 = vpop.f32.mrf.mxu0
        %v329 = vadd.f32 0.0, %v328
        %v330 = vpop.f32.mrf.mxu0
        %331 = vdwg.mxu0
        %v332 = vlaneseq
        %v333 = vshrl.u32 %v332, 7
        %v334 = vlaneseq
        %v335 = vand.u32 %v334, 127
        %vm336 = vcmp.le.s32.totalorder %v335, %v333
        %337 = vmatprep.subr.mxu0 0.0
        %338 = vmatpush1.xpose.msra.mxu0 0.0
        %339 = vmatprep.subr.mxu0 0.0
        %340 = vmatpush1.xpose.msra.mxu0 0.0
        %341 = vmatprep.subr.mxu0 0.0
        %342 = vmatpush1.xpose.msra.mxu0 0.0
        %343 = vmatprep.subr.mxu0 0.0
        %344 = vmatpush1.xpose.msra.mxu0 0.0
        %345 = vmatprep.subr.mxu0 0.0
        %346 = vmatpush1.xpose.msra.mxu0 0.0
        %347 = vmatprep.subr.mxu0 0.0
        %348 = vmatpush1.xpose.msra.mxu0 0.0
        %349 = vmatprep.subr.mxu0 0.0
        %350 = vmatpush1.xpose.msra.mxu0 0.0
        %351 = vmatprep.subr.mxu0 0.0
        %352 = vmatpush1.xpose.msra.mxu0 0.0
        %353 = vmatprep.subr.mxu0 0.0
        %354 = vmatpush1.xpose.msra.mxu0 0.0
        %355 = vmatprep.subr.mxu0 0.0
        %356 = vmatpush1.xpose.msra.mxu0 0.0
        %357 = vmatprep.subr.mxu0 0.0
        %358 = vmatpush1.xpose.msra.mxu0 0.0
        %359 = vmatprep.subr.mxu0 0.0
        %360 = vmatpush1.xpose.msra.mxu0 0.0
        %361 = vmatprep.subr.mxu0 0.0
        %362 = vmatpush1.xpose.msra.mxu0 0.0
        %363 = vmatprep.subr.mxu0 0.0
        %364 = vmatpush1.xpose.msra.mxu0 0.0
        %365 = vmatprep.subr.mxu0 0.0
        %366 = vmatpush1.xpose.msra.mxu0 0.0
        %367 = vmatprep.subr.mxu0 0.0
        %368 = vmatpush1.xpose.msra.mxu0 %v258
        %369 = vmatprep.subr.mxu0 0.0
        %370 = vmatpush2.xpose.msra.mxu0 0.0
        %371 = vmatprep.subr.mxu0 0.0
        %372 = vmatpush2.xpose.msra.mxu0 0.0
        %373 = vmatprep.subr.mxu0 0.0
        %374 = vmatpush2.xpose.msra.mxu0 0.0
        %375 = vmatprep.subr.mxu0 0.0
        %376 = vmatpush2.xpose.msra.mxu0 0.0
        %377 = vmatprep.subr.mxu0 0.0
        %378 = vmatpush2.xpose.msra.mxu0 0.0
        %379 = vmatprep.subr.mxu0 0.0
        %380 = vmatpush2.xpose.msra.mxu0 0.0
        %381 = vmatprep.subr.mxu0 0.0
        %382 = vmatpush2.xpose.msra.mxu0 0.0
        %383 = vmatprep.subr.mxu0 0.0
        %384 = vmatpush2.xpose.msra.mxu0 0.0
        %385 = vmatprep.subr.mxu0 0.0
        %386 = vmatpush2.xpose.msra.mxu0 0.0
        %387 = vmatprep.subr.mxu0 0.0
        %388 = vmatpush2.xpose.msra.mxu0 0.0
        %389 = vmatprep.subr.mxu0 0.0
        %390 = vmatpush2.xpose.msra.mxu0 0.0
        %391 = vmatprep.subr.mxu0 0.0
        %392 = vmatpush2.xpose.msra.mxu0 0.0
        %393 = vmatprep.subr.mxu0 0.0
        %394 = vmatpush2.xpose.msra.mxu0 0.0
        %395 = vmatprep.subr.mxu0 0.0
        %396 = vmatpush2.xpose.msra.mxu0 0.0
        %397 = vmatprep.subr.mxu0 0.0
        %398 = vmatpush2.xpose.msra.mxu0 0.0
        %399 = vmatprep.subr.mxu0 0.0
        %400 = vmatpush2.xpose.msra.mxu0 0.0
        %401 = vmatprep.mubr.f32.mxu0 0.0
        %402 = vmatmul.mubr.f32.gmra.mxu0 %v260
        %v403 = vpop.f32.mrf.mxu0
        %v404 = vadd.f32 0.0, %v403
        %v405 = vpop.f32.mrf.mxu0
        %406 = vdwg.mxu0
        %v407 = vsel %vm336, %v404, -1e+30
        %vm408 = vcmask 64512
        %v409 = vsel %vm408, %v407, -inf
        %410 = vmax.xlane.f32.xlu0 %v409
        %v411 = vpop.xlane.xlu0 %410
        %v412 = vsub.f32 %v407, %v411
        %v413 = vmul.f32 %v412, 1.442695
        %v414 = vpow.pop %v413
        %v415 = vsel %vm408, %v414, 0.0
        %416 = vadd.xlane.f32.xlu0 %v415
        %v417 = vpop.xlane.xlu0 %416
        %v418 = vrcp.pop %v417
        %v419 = vmul.f32 %v414, %v418
        %v421 = vsel %vm408, %v419, 0
        %423 = vmatprep.subr.mxu0 0.0
        %424 = vmatpush1.msra.mxu0 0.0
        %425 = vmatprep.subr.mxu0 0.0
        %426 = vmatpush1.msra.mxu0 0.0
        %427 = vmatprep.subr.mxu0 0.0
        %428 = vmatpush1.msra.mxu0 0.0
        %429 = vmatprep.subr.mxu0 0.0
        %430 = vmatpush1.msra.mxu0 0.0
        %431 = vmatprep.subr.mxu0 0.0
        %432 = vmatpush1.msra.mxu0 0.0
        %433 = vmatprep.subr.mxu0 0.0
        %434 = vmatpush1.msra.mxu0 0.0
        %435 = vmatprep.subr.mxu0 0.0
        %436 = vmatpush1.msra.mxu0 0.0
        %437 = vmatprep.subr.mxu0 0.0
        %438 = vmatpush1.msra.mxu0 0.0
        %439 = vmatprep.subr.mxu0 0.0
        %440 = vmatpush1.msra.mxu0 0.0
        %441 = vmatprep.subr.mxu0 0.0
        %442 = vmatpush1.msra.mxu0 0.0
        %443 = vmatprep.subr.mxu0 0.0
        %444 = vmatpush1.msra.mxu0 0.0
        %445 = vmatprep.subr.mxu0 0.0
        %446 = vmatpush1.msra.mxu0 0.0
        %447 = vmatprep.subr.mxu0 0.0
        %448 = vmatpush1.msra.mxu0 0.0
        %449 = vmatprep.subr.mxu0 0.0
        %450 = vmatpush1.msra.mxu0 0.0
        %451 = vmatprep.subr.mxu0 0.0
        %452 = vmatpush1.msra.mxu0 0.0
        %453 = vmatprep.subr.mxu0 0.0
        %454 = vmatpush1.msra.mxu0 %v329
        %455 = vmatprep.subr.mxu0 0.0
        %456 = vmatpush2.msra.mxu0 0.0
        %457 = vmatprep.subr.mxu0 0.0
        %458 = vmatpush2.msra.mxu0 0.0
        %459 = vmatprep.subr.mxu0 0.0
        %460 = vmatpush2.msra.mxu0 0.0
        %461 = vmatprep.subr.mxu0 0.0
        %462 = vmatpush2.msra.mxu0 0.0
        %463 = vmatprep.subr.mxu0 0.0
        %464 = vmatpush2.msra.mxu0 0.0
        %465 = vmatprep.subr.mxu0 0.0
        %466 = vmatpush2.msra.mxu0 0.0
        %467 = vmatprep.subr.mxu0 0.0
        %468 = vmatpush2.msra.mxu0 0.0
        %469 = vmatprep.subr.mxu0 0.0
        %470 = vmatpush2.msra.mxu0 0.0
        %471 = vmatprep.subr.mxu0 0.0
        %472 = vmatpush2.msra.mxu0 0.0
        %473 = vmatprep.subr.mxu0 0.0
        %474 = vmatpush2.msra.mxu0 0.0
        %475 = vmatprep.subr.mxu0 0.0
        %476 = vmatpush2.msra.mxu0 0.0
        %477 = vmatprep.subr.mxu0 0.0
        %478 = vmatpush2.msra.mxu0 0.0
        %479 = vmatprep.subr.mxu0 0.0
        %480 = vmatpush2.msra.mxu0 0.0
        %481 = vmatprep.subr.mxu0 0.0
        %482 = vmatpush2.msra.mxu0 0.0
        %483 = vmatprep.subr.mxu0 0.0
        %484 = vmatpush2.msra.mxu0 0.0
        %485 = vmatprep.subr.mxu0 0.0
        %486 = vmatpush2.msra.mxu0 0.0
        %487 = vmatprep.mubr.f32.mxu0 0.0
        %488 = vmatmul.mubr.f32.gmra.mxu0 %v421
        %v489 = vpop.f32.mrf.mxu0
        %v490 = vadd.f32 0.0, %v489
        %v491 = vpop.f32.mrf.mxu0
        %492 = vdwg.mxu0
        %493 = vst [vmem:[%s173] sm:$0xff] %v490
        %s494 = sand.u32 %s75, 1
        %s495 = scalar_lea.sflag [#allocation4], %s494
        %s496 = sand.u32 %s75, 1
        %s497 = smul.addr %s496, 8
        %s498 = scalar_lea.vmem [#allocation7], %s497
        // Predicated region
        $region37: #{tpu_custom_call.1} parent=27 // pred_check
          %p499 = pneg %p85
        $region38: #{tpu_custom_call.1} parent=27 // pred_check_branch
          %501 = sbr.rel (%p499) target = $region40
        $region39: #{tpu_custom_call.1} parent=27 // pred_region
          %s503 = ssub.s32 128, 128
          %504 = vsyncadd %s495, %s503
          %s505 = smul.addr %s20, 128
          %s506 = scalar_lea.hbm %s2, %s505
          %s508 = sshll.u32 %s498, 4
          %s509 = int_to_ptr.vmem [resolvable:$true] %s508
          %511 = dma.vmem_to_hbm [thread:$0]  %s509, 128, %s506, %s495
        $region40: #{tpu_custom_call.1} parent=27 // pred_fallthru
          _
      $region28: #{tpu_custom_call.1} parent=5 // pred_fallthru
        _
      %p512 = scmp.le.s32.totalorder 2, %s15
      // Predicated region
      $region41: #{tpu_custom_call.1} parent=5 // pred_check
        %p513 = pneg %p512
      $region42: #{tpu_custom_call.1} parent=5 // pred_check_branch
        %515 = sbr.rel (%p513) target = $region44
      $region43: #{tpu_custom_call.1} parent=5 // pred_region
        %s516 = ssub.s32 %s15, 2
        // Predicated region
        $region45: #{tpu_custom_call.1} parent=43 // pred_check
          %p517 = pneg %p91
        $region46: #{tpu_custom_call.1} parent=43 // pred_check_branch
          %519 = sbr.rel (%p517) target = $region48
        $region47: #{tpu_custom_call.1} parent=43 // pred_region
          %s520 = sand.u32 %s76, 1
          %s521 = scalar_lea.sflag [#allocation4], %s520
          %s522 = sand.u32 %s76, 1
          %s523 = smul.addr %s522, 8
          %s524 = scalar_lea.vmem [#allocation7], %s523
          %525 = dma.done %s521, 128
        $region48: #{tpu_custom_call.1} parent=43 // pred_fallthru
          _
      $region44: #{tpu_custom_call.1} parent=5 // pred_fallthru
        _
    $region6: #{tpu_custom_call.1} parent=1 // loop_footer
      %s19 = sadd.s32 1, %s15
    $region7: #{tpu_custom_call.1} parent=1 // loop_footer_branch
      %14 = sbr.rel target = $region3
    $region8: #{tpu_custom_call.1} parent=1 // loop_exit
      _
    %526 = vsyncpa [#allocation3], 1
    %s527 = scalar_lea.sflag [#allocation3], 1
    %528 = vsyncpa %s527, 1
    %529 = vsyncpa [#allocation6], 1
    %530 = vsyncpa [#allocation4], 1
    %s531 = scalar_lea.sflag [#allocation4], 1
    %532 = vsyncpa %s531, 1

</llo_original>
